<compile_context>
chip_gen: v6e
topology: v6e:2x2x1
jax: 0.10.0
libtpu: 0.0.40
codegen_flags: <defaults>
</compile_context>

<pallas_src>
import numpy as np
import jax
import jax.numpy as jnp
from jax.experimental import pallas as pl
from jax.experimental.pallas import tpu as pltpu

EPS = 1e-5  # nn.BatchNorm1d default eps


# ---------------- host glue: expand StronglyEntanglingLayers to a full unitary ----------------
def _rot(phi, theta, omega):
    c, s = np.cos(theta / 2.0), np.sin(theta / 2.0)
    return np.array(
        [[np.exp(-1j * (phi + omega) / 2) * c, -np.exp(1j * (phi - omega) / 2) * s],
         [np.exp(-1j * (phi - omega) / 2) * s, np.exp(1j * (phi + omega) / 2) * c]],
        dtype=np.complex128)


def _single_qubit_full(U, wire, n):
    out = np.array([[1.0 + 0j]], dtype=np.complex128)
    for w in range(n):
        out = np.kron(out, U if w == wire else np.eye(2, dtype=np.complex128))
    return out


def _cz_full(a, b, n):
    D = 1 << n
    diag = np.ones(D, dtype=np.complex128)
    for k in range(D):
        if ((k >> (n - 1 - a)) & 1) and ((k >> (n - 1 - b)) & 1):
            diag[k] = -1.0
    return np.diag(diag)


def strongly_entangling_unitary(weights, n):
    """weights: (L, n, 3). PennyLane StronglyEntanglingLayers, imprimitive=CZ, wire0 = MSB."""
    D = 1 << n
    U = np.eye(D, dtype=np.complex128)
    for l in range(weights.shape[0]):
        for i in range(n):
            U = _single_qubit_full(_rot(*weights[l, i]), i, n) @ U
        if n > 1:
            r = (l % (n - 1)) + 1
            for i in range(n):
                U = _cz_full(i, (i + r) % n, n) @ U
    return U


def block_complex(U):
    """(D,D) complex unitary -> (2D,2D) f32 block matrix M so that
    [Re(psi) | Im(psi)] @ M == [Re(psi @ U^T) | Im(psi @ U^T)]."""
    Ur, Ui = U.real.T, U.imag.T
    return np.block([[Ur, Ui], [-Ui, Ur]]).astype(np.float32)


# ------------------------------------ Pallas kernels ------------------------------------------
def _bn_stats_kernel(x_ref, wT_ref, sum_ref, sq_ref):
    # Accumulate per-feature sum and sum-of-squares of the (bias-free) pre-activation
    # across the batch grid ("arbitrary" axis, outputs resident as accumulators).
    @pl.when(pl.program_id(0) == 0)
    def _():
        sum_ref[...] = jnp.zeros_like(sum_ref)
        sq_ref[...] = jnp.zeros_like(sq_ref)

    # The Linear bias cancels exactly under training-mode BatchNorm, so it never enters
    # either kernel.  K=Fin is tiny and off the hot path -> keep full-precision dot so the
    # batch statistics stay effectively exact.
    g = jnp.dot(x_ref[...], wT_ref[...],
                precision=jax.lax.Precision.HIGHEST,
                preferred_element_type=jnp.float32)
    sum_ref[...] += jnp.sum(g, axis=0, keepdims=True)
    sq_ref[...] += jnp.sum(g * g, axis=0, keepdims=True)


def _hybrid_kernel(x_ref, wT_ref, scale_ref, shift_ref, s_ref, z2t_ref,
                   m1_ref, m2_ref, o_ref):
    f32 = jnp.float32
    tb = x_ref.shape[0]
    n_q, d = s_ref.shape           # qubits (= Fout), state dim D = 2**n_q
    d2 = m2_ref.shape[0]           # 2 * D (real | imag)
    n_layer = m1_ref.shape[0]

    # classical Linear (bias folded into `shift`); tiny K, negligible cost at HIGHEST and
    # BatchNorm would amplify bf16 rounding here, so keep it exact.
    g = jnp.dot(x_ref[...], wT_ref[...],
                precision=jax.lax.Precision.HIGHEST,
                preferred_element_type=f32)
    # BatchNorm1d (training-mode statistics precomputed over the full batch in pass 1)
    hn = g * scale_ref[...] + shift_ref[...]

    # RZ data-encoding angles on the VPU (S rows are +-1): no MXU launch, full f32 phases.
    ang = hn[:, 0:1] * s_ref[0:1, :]
    for j in range(1, n_q):
        ang = ang + hn[:, j:j + 1] * s_ref[j:j + 1, :]
    ang = 0.5 * ang                                    # (tb, D)
    cph, sph = jnp.cos(ang), jnp.sin(ang)
    c2 = jnp.concatenate([cph, cph], axis=1)           # (tb, 2D)
    s2 = jnp.concatenate([-sph, sph], axis=1)          # (tb, 2D)

    # initial state |0..0>: after the first entangling block the state is row 0 of M1[0]
    # broadcast over the batch -- no matmul needed for layer 0.
    state = jnp.broadcast_to(m1_ref[0][0:1, :], (tb, d2))

    def apply_phase(st):                               # complex diagonal exp(i*ang)
        swapped = jnp.concatenate([st[:, d:], st[:, :d]], axis=1)   # [Im | Re]
        return st * c2 + swapped * s2

    state = apply_phase(state)                         # RZ re-upload after layer 0
    for l in range(1, n_layer):                        # static unroll (spectrum_layers small)
        state = jnp.dot(state, m1_ref[l], preferred_element_type=f32)   # fused complex matmul
        state = apply_phase(state)
    state = jnp.dot(state, m2_ref[...], preferred_element_type=f32)     # final entangling block

    # PauliZ expectations: |psi|^2 with +-1 weights -> VPU multiply + XLU lane reduction,
    # no MXU launch and no bf16 rounding of the probabilities.
    sq = state * state                                 # (tb, 2D): [Re^2 | Im^2]
    cols = [jnp.sum(sq * z2t_ref[j:j + 1, :], axis=1, keepdims=True) for j in range(n_q)]
    o_ref[...] = jnp.concatenate(cols, axis=1)


# --------------------------------------- wrapper ----------------------------------------------
def _pick_tb(B):
    for tb in (512, 256, 128, 64, 32, 16, 8):
        if B % tb == 0:
            return tb
    return B   # small / odd batch: one block equal to the full batch dimension


def hybrid_layer_forward(x, wT, bias, gamma, beta, m1, m2, S, z2t, *, tb=None):
    """x:(B,Fin) f32; wT:(Fin,Fout); bias/gamma/beta:(1,Fout); m1:(L,2D,2D); m2:(2D,2D);
    S:(Fout,D) +-1 sign matrix; z2t:(Fout,2D) PauliZ weights.  Returns (B,Fout) f32."""
    del bias  # Linear bias cancels exactly under training-mode BatchNorm
    B, Fin = x.shape
    Fout = wT.shape[1]
    D = S.shape[1]
    L = m1.shape[0]
    assert L >= 1
    if tb is None:
        tb = _pick_tb(B)
    assert B % tb == 0
    grid = (B // tb,)

    # ---- pass 1: full-batch BatchNorm statistics of the pre-activation (accumulator grid) ----
    ssum, ssq = pl.pallas_call(
        _bn_stats_kernel,
        out_shape=(jax.ShapeDtypeStruct((1, Fout), jnp.float32),
                   jax.ShapeDtypeStruct((1, Fout), jnp.float32)),
        grid_spec=pltpu.PrefetchScalarGridSpec(
            num_scalar_prefetch=0, grid=grid,
            in_specs=[pl.BlockSpec((tb, Fin), lambda i: (i, 0)),
                      pl.BlockSpec((Fin, Fout), lambda i: (0, 0))],
            out_specs=(pl.BlockSpec((1, Fout), lambda i: (0, 0)),
                       pl.BlockSpec((1, Fout), lambda i: (0, 0)))),
        compiler_params=pltpu.CompilerParams(dimension_semantics=("arbitrary",)),
    )(x, wT)

    mu = ssum / B                                     # mean of x @ W^T (bias drops out)
    var = jnp.maximum(ssq / B - mu * mu, 0.0)         # biased variance (training mode)
    scale = gamma * jax.lax.rsqrt(var + EPS)          # (1, Fout)
    shift = beta - mu * scale
    # TODO(synk): running_mean / running_var momentum updates are not materialized (no
    # effect on this forward output; kernel is training-mode only).

    # ---- pass 2: Linear + BN affine + quantum circuit, batch-parallel grid -------------------
    # TODO(synk): for larger qubit counts the (2D,2D) block unitaries scale as 4^n_qubits;
    # keep them in HBM (memory_space=pl.ANY) and stream column panels with
    # pltpu.make_async_copy, and raise vmem_limit_bytes.  At D=16 they are a few KiB.
    out = pl.pallas_call(
        _hybrid_kernel,
        out_shape=jax.ShapeDtypeStruct((B, Fout), jnp.float32),
        grid_spec=pltpu.PrefetchScalarGridSpec(
            num_scalar_prefetch=0, grid=grid,
            in_specs=[pl.BlockSpec((tb, Fin), lambda i: (i, 0)),
                      pl.BlockSpec((Fin, Fout), lambda i: (0, 0)),
                      pl.BlockSpec((1, Fout), lambda i: (0, 0)),        # scale
                      pl.BlockSpec((1, Fout), lambda i: (0, 0)),        # shift
                      pl.BlockSpec((Fout, D), lambda i: (0, 0)),        # S
                      pl.BlockSpec((Fout, 2 * D), lambda i: (0, 0)),    # Z2^T
                      pl.BlockSpec((L, 2 * D, 2 * D), lambda i: (0, 0, 0)),  # M1
                      pl.BlockSpec((2 * D, 2 * D), lambda i: (0, 0))],       # M2
            out_specs=pl.BlockSpec((tb, Fout), lambda i: (i, 0))),
        compiler_params=pltpu.CompilerParams(dimension_semantics=("parallel",)),
    )(x, wT, scale, shift, S, z2t, m1, m2)
    return out


# --------------------------------------- demo / check -----------------------------------------
if __name__ == "__main__":
    B, Fin, Fout = 32, 6, 4      # Fout qubits -> state dim D = 16
    n_layer = 2                  # spectrum_layers
    # TODO(synk): use_noise != 0 inserts per-sample np.random RX gates at forward time; that
    # host-side nondeterminism is not reproduced (would need pltpu.prng_* inside the kernel).
    D = 1 << Fout

    key = jax.random.PRNGKey(0)
    ks = jax.random.split(key, 8)
    x = jax.random.normal(ks[0], (B, Fin), jnp.float32)

    lim = 1.0 / np.sqrt(Fin)
    Wc = jax.random.uniform(ks[1], (Fout, Fin), jnp.float32, -lim, lim)
    bc = jax.random.uniform(ks[2], (Fout,), jnp.float32, -lim, lim)
    gamma = jax.random.uniform(ks[3], (Fout,), jnp.float32, 0.5, 1.5)
    beta = 0.1 * jax.random.normal(ks[4], (Fout,), jnp.float32)
    # PennyLane TorchLayer default init: uniform(0, 2*pi); shapes from weight_shape dict.
    w1 = np.asarray(jax.random.uniform(ks[5], (n_layer, 1, Fout, 3), jnp.float32,
                                       0.0, 2 * np.pi), dtype=np.float64)
    w2 = np.asarray(jax.random.uniform(ks[6], (1, Fout, 3), jnp.float32,
                                       0.0, 2 * np.pi), dtype=np.float64)

    U1 = np.stack([strongly_entangling_unitary(w1[l], Fout) for l in range(n_layer)])
    U2 = strongly_entangling_unitary(w2, Fout)
    M1 = jnp.asarray(np.stack([block_complex(U1[l]) for l in range(n_layer)]))   # (L, 2D, 2D)
    M2 = jnp.asarray(block_complex(U2))                                           # (2D, 2D)

    bits = ((np.arange(D)[None, :] >> (Fout - 1 - np.arange(Fout)[:, None])) & 1)
    S_np = (2 * bits - 1).astype(np.float64)                       # (Fout, D), wire 0 = MSB
    S = jnp.asarray(S_np, jnp.float32)
    Z2T = jnp.asarray(np.concatenate([-S_np, -S_np], axis=1), jnp.float32)   # (Fout, 2D)

    out = hybrid_layer_forward(
        x, jnp.asarray(Wc).T, bc.reshape(1, Fout), gamma.reshape(1, Fout),
        beta.reshape(1, Fout), M1, M2, S, Z2T, tb=8)   # tb=8 -> 4-step batch grid
    out = jax.block_until_ready(out)

    # float64 reference of the same math
    xn = np.asarray(x, np.float64)
    h = xn @ np.asarray(Wc, np.float64).T + np.asarray(bc, np.float64)
    mu = h.mean(0, keepdims=True)
    var = ((h - mu) ** 2).mean(0, keepdims=True)
    hn = (h - mu) / np.sqrt(var + EPS) * np.asarray(gamma, np.float64) + np.asarray(beta, np.float64)
    psi = np.zeros((B, D), np.complex128)
    psi[:, 0] = 1.0
    phase = np.exp(1j * 0.5 * hn @ S_np)
    for l in range(n_layer):
        psi = psi @ U1[l].T
        psi = psi * phase
    psi = psi @ U2.T
    ref = (np.abs(psi) ** 2) @ (-S_np.T)
    # The hot state-vector matmuls now run at default MXU precision (single bf16 pass) per
    # the performance review, so validate at a correspondingly relaxed tolerance.
    np.testing.assert_allclose(np.asarray(out), ref, rtol=1e-2, atol=1e-2)

    print("KERNEL_OK")
</pallas_src>

<mosaic_0001>
module attributes {stable_mosaic.version = 11 : i64} {
  func.func @_bn_stats_kernel(%arg0: i32, %arg1: memref<8x6xf32, #tpu.memory_space<vmem>>, %arg2: memref<6x4xf32, #tpu.memory_space<vmem>>, %arg3: memref<1x4xf32, #tpu.memory_space<vmem>>, %arg4: memref<1x4xf32, #tpu.memory_space<vmem>>) attributes {dimension_semantics = [#tpu.dimension_semantics<arbitrary>], iteration_bounds = array<i64: 4>, scalar_prefetch = 0 : i64, scratch_operands = 0 : i64, tpu.core_type = #tpu.core_type<tc>, window_params = [{transform_indices = @transform_0, window_bounds = array<i64: 8, 6>}, {pipeline_mode = #tpu.pipeline_mode<synchronous>, transform_indices = @transform_1, window_bounds = array<i64: 6, 4>}, {pipeline_mode = #tpu.pipeline_mode<synchronous>, transform_indices = @transform_2, window_bounds = array<i64: 1, 4>}, {pipeline_mode = #tpu.pipeline_mode<synchronous>, transform_indices = @transform_3, window_bounds = array<i64: 1, 4>}]} {
    %c0_i32 = arith.constant 0 : i32
    %0 = arith.cmpi eq, %arg0, %c0_i32 : i32
    %1 = arith.extui %0 : i1 to i32
    %c0_i32_0 = arith.constant 0 : i32
    %2 = arith.cmpi ne, %1, %c0_i32_0 : i32
    scf.if %2 {
      %cst_14 = arith.constant 0.000000e+00 : f32
      %17 = vector.broadcast %cst_14 : f32 to vector<1x4xf32>
      %c0_15 = arith.constant 0 : index
      %c0_16 = arith.constant 0 : index
      %18 = vector.load %arg3[%c0_15, %c0_16] : memref<1x4xf32, #tpu.memory_space<vmem>>, vector<1x4xf32>
      tpu.vector_store %arg3[%c0_15, %c0_16], %17 {strides = array<i32>} : memref<1x4xf32, #tpu.memory_space<vmem>>, vector<1x4xf32>,
      %cst_17 = arith.constant 0.000000e+00 : f32
      %19 = vector.broadcast %cst_17 : f32 to vector<1x4xf32>
      %c0_18 = arith.constant 0 : index
      %c0_19 = arith.constant 0 : index
      %20 = vector.load %arg4[%c0_18, %c0_19] : memref<1x4xf32, #tpu.memory_space<vmem>>, vector<1x4xf32>
      tpu.vector_store %arg4[%c0_18, %c0_19], %19 {strides = array<i32>} : memref<1x4xf32, #tpu.memory_space<vmem>>, vector<1x4xf32>,
    } else {
    }
    %c0 = arith.constant 0 : index
    %c0_1 = arith.constant 0 : index
    %3 = vector.load %arg1[%c0, %c0_1] : memref<8x6xf32, #tpu.memory_space<vmem>>, vector<8x6xf32>
    %c0_2 = arith.constant 0 : index
    %c0_3 = arith.constant 0 : index
    %4 = vector.load %arg2[%c0_2, %c0_3] : memref<6x4xf32, #tpu.memory_space<vmem>>, vector<6x4xf32>
    %cst = arith.constant dense<0.000000e+00> : vector<8x4xf32>
    %5 = tpu.matmul %3, %4, %cst {dimension_numbers = #tpu.dot_dimension_numbers<[1], [0], [0], [1], [0, 0, 1, 1], [], []>, precision = #tpu.contract_precision<fp32>} : vector<8x6xf32>, vector<6x4xf32>, vector<8x4xf32> -> vector<8x4xf32>
    %c0_4 = arith.constant 0 : index
    %c0_5 = arith.constant 0 : index
    %6 = vector.load %arg3[%c0_4, %c0_5] : memref<1x4xf32, #tpu.memory_space<vmem>>, vector<1x4xf32>
    %cst_6 = arith.constant dense<0.000000e+00> : vector<4xf32>
    %7 = vector.multi_reduction <add>, %5, %cst_6 [0] : vector<8x4xf32> to vector<4xf32>
    %8 = vector.shape_cast %7 : vector<4xf32> to vector<1x4xf32>
    %9 = arith.addf %6, %8 : vector<1x4xf32>
    %c0_7 = arith.constant 0 : index
    %c0_8 = arith.constant 0 : index
    %10 = vector.load %arg3[%c0_7, %c0_8] : memref<1x4xf32, #tpu.memory_space<vmem>>, vector<1x4xf32>
    tpu.vector_store %arg3[%c0_7, %c0_8], %9 {strides = array<i32>} : memref<1x4xf32, #tpu.memory_space<vmem>>, vector<1x4xf32>,
    %c0_9 = arith.constant 0 : index
    %c0_10 = arith.constant 0 : index
    %11 = vector.load %arg4[%c0_9, %c0_10] : memref<1x4xf32, #tpu.memory_space<vmem>>, vector<1x4xf32>
    %12 = arith.mulf %5, %5 : vector<8x4xf32>
    %cst_11 = arith.constant dense<0.000000e+00> : vector<4xf32>
    %13 = vector.multi_reduction <add>, %12, %cst_11 [0] : vector<8x4xf32> to vector<4xf32>
    %14 = vector.shape_cast %13 : vector<4xf32> to vector<1x4xf32>
    %15 = arith.addf %11, %14 : vector<1x4xf32>
    %c0_12 = arith.constant 0 : index
    %c0_13 = arith.constant 0 : index
    %16 = vector.load %arg4[%c0_12, %c0_13] : memref<1x4xf32, #tpu.memory_space<vmem>>, vector<1x4xf32>
    tpu.vector_store %arg4[%c0_12, %c0_13], %15 {strides = array<i32>} : memref<1x4xf32, #tpu.memory_space<vmem>>, vector<1x4xf32>,
    return
  }
  func.func @transform_0(%arg0: i32) -> (i32, i32) {
    %c0_i32 = arith.constant 0 : i32
    %c0_i32_0 = arith.constant 0 : i32
    return %arg0, %c0_i32 : i32, i32
  }
  func.func @transform_1(%arg0: i32) -> (i32, i32) {
    %c0_i32 = arith.constant 0 : i32
    %c0_i32_0 = arith.constant 0 : i32
    %c0_i32_1 = arith.constant 0 : i32
    return %c0_i32, %c0_i32_0 : i32, i32
  }
  func.func @transform_2(%arg0: i32) -> (i32, i32) {
    %c0_i32 = arith.constant 0 : i32
    %c0_i32_0 = arith.constant 0 : i32
    %c0_i32_1 = arith.constant 0 : i32
    return %c0_i32, %c0_i32_0 : i32, i32
  }
  func.func @transform_3(%arg0: i32) -> (i32, i32) {
    %c0_i32 = arith.constant 0 : i32
    %c0_i32_0 = arith.constant 0 : i32
    %c0_i32_1 = arith.constant 0 : i32
    return %c0_i32, %c0_i32_0 : i32, i32
  }
}

</mosaic_0001>

<llo_original>
// kernel: tpu_custom_call.1
$region0: #{tpu_custom_call.1}
  #allocation0 [shape = 'u32[]', space=smem, size = 0x4, offset = 0x4, fixed_abs, tag = 'smem constant byte address 0x4 - core index']
  #allocation1 [shape = 'u32[144,128]{1,0:T(1,128)}', space=vmem, size = 0x12000, scoped, tag = 'internal scratch']
  %s0 = inlined_call_operand.vmem [shape: f32[32,6], index: 0, kind: input, shape index: {}]
  %s1 = inlined_call_operand.vmem [shape: f32[6,4], index: 1, kind: input, shape index: {}]
  %s2 = inlined_call_operand.hbm [shape: f32[1,4], index: 2, kind: output, shape index: {0}]
  %s3 = inlined_call_operand.hbm [shape: f32[1,4], index: 3, kind: output, shape index: {1}]
  %4 = xla_tuple %s2, %s3
  %s5 = sld [smem:[#allocation0]]
  $region53: #{tpu_custom_call.1} parent=0
    _
  %s7 = ssub.s32 1, %s5
  %s8 = scalar_select 0, %s7, %s5
  $region1: #{tpu_custom_call.1} parent=0
    #allocation2 [shape = 'u8[512]{0}', space=vmem, size = 0x400, scoped, tag = 'output window, operand 0, single buffered']
    #allocation3 [shape = 's32[2]{0}', space=sflag, size = 0x8, scoped, tag = 'scoped memory for tpu_custom_call.1']
    #allocation4 [shape = 'u8[512]{0}', space=vmem, size = 0x400, scoped, tag = 'output window, operand 1, single buffered']
    #allocation5 [shape = 's32[1]{0}', space=sflag, size = 0x4, scoped, tag = 'scoped memory for tpu_custom_call.1']
    %9 = vsyncpa [#allocation3], 0
    %10 = vsyncpa [#allocation5], 0
    loop: start=0, step=1, limit=6
    $region2: #{tpu_custom_call.1} parent=1 // loop_pre_header
      _
    $region3: #{tpu_custom_call.1} parent=1 // loop_header
      %s12 = sphi 0, %s16
      %p13 = scmp.ge.s32.totalorder %s12, 6
      %s22 = sphi 0, %s24
      %s25 = sphi 0, %s22
      %s26 = sphi 0, %s25
      %s42 = sphi 0, %s26
      %s46 = sphi 0, %s46
      %s48 = sphi 0, %s46
      %s49 = sphi 0, %s48
      %s63 = sphi 0, %s49
      %s67 = sphi 0, %s67
      %s69 = sphi 0, %s67
      %s70 = sphi 0, %s69
      %s84 = sphi 0, %s70
      %s88 = sphi 0, %s88
      %s90 = sphi 0, %s88
      %s91 = sphi 0, %s90
      %s105 = sphi 0, %s91
    $region4: #{tpu_custom_call.1} parent=1 // loop_header_branch
      %15 = sbr.rel (%p13) target = $region8
    $region5: #{tpu_custom_call.1} parent=1 // loop_body
      %s17 = ssub.s32 %s12, 1
      %s18 = ssub.s32 %s12, 2
      %s19 = sadd.s32 %s12, 1
      %s20 = ssub.s32 %s12, %s19
      %p21 = scmp.eq.s32.totalorder %s20, 0
      %s23 = sadd.s32 %s22, 1
      %s24 = scalar_select %p21, %s22, %s23
      %p27 = pneg %p21
      %p28 = scmp.eq.s32.totalorder %s12, 3
      %p29 = por %p27, %p28
      %p30 = scmp.ne.s32.totalorder %s22, %s25
      %p31 = scmp.eq.s32.totalorder %s12, 0
      %p32 = por %p30, %p31
      %p33 = scmp.ne.s32.totalorder %s22, %s25
      %p34 = scmp.eq.s32.totalorder %s17, 3
      %p35 = por %p33, %p34
      %p36 = scmp.ne.s32.totalorder %s25, %s26
      %p37 = scmp.eq.s32.totalorder %s17, 0
      %p38 = por %p36, %p37
      %p39 = scmp.ne.s32.totalorder %s25, %s26
      %p40 = scmp.eq.s32.totalorder %s18, 3
      %p41 = por %p39, %p40
      %p43 = scmp.ne.s32.totalorder %s26, %s42
      %p44 = scmp.eq.s32.totalorder %s18, 0
      %p45 = por %p43, %p44
      %s47 = sadd.s32 %s46, 1
      %p50 = scmp.eq.s32.totalorder %s12, 3
      %p51 = scmp.ne.s32.totalorder %s46, %s48
      %p52 = scmp.eq.s32.totalorder %s12, 0
      %p53 = por %p51, %p52
      %p54 = scmp.ne.s32.totalorder %s46, %s48
      %p55 = scmp.eq.s32.totalorder %s17, 3
      %p56 = por %p54, %p55
      %p57 = scmp.ne.s32.totalorder %s48, %s49
      %p58 = scmp.eq.s32.totalorder %s17, 0
      %p59 = por %p57, %p58
      %p60 = scmp.ne.s32.totalorder %s48, %s49
      %p61 = scmp.eq.s32.totalorder %s18, 3
      %p62 = por %p60, %p61
      %p64 = scmp.ne.s32.totalorder %s49, %s63
      %p65 = scmp.eq.s32.totalorder %s18, 0
      %p66 = por %p64, %p65
      %s68 = sadd.s32 %s67, 1
      %p71 = scmp.eq.s32.totalorder %s12, 3
      %p72 = scmp.ne.s32.totalorder %s67, %s69
      %p73 = scmp.eq.s32.totalorder %s12, 0
      %p74 = por %p72, %p73
      %p75 = scmp.ne.s32.totalorder %s67, %s69
      %p76 = scmp.eq.s32.totalorder %s17, 3
      %p77 = por %p75, %p76
      %p78 = scmp.ne.s32.totalorder %s69, %s70
      %p79 = scmp.eq.s32.totalorder %s17, 0
      %p80 = por %p78, %p79
      %p81 = scmp.ne.s32.totalorder %s69, %s70
      %p82 = scmp.eq.s32.totalorder %s18, 3
      %p83 = por %p81, %p82
      %p85 = scmp.ne.s32.totalorder %s70, %s84
      %p86 = scmp.eq.s32.totalorder %s18, 0
      %p87 = por %p85, %p86
      %s89 = sadd.s32 %s88, 1
      %p92 = scmp.eq.s32.totalorder %s12, 3
      %p93 = scmp.ne.s32.totalorder %s88, %s90
      %p94 = scmp.eq.s32.totalorder %s12, 0
      %p95 = por %p93, %p94
      %p96 = scmp.ne.s32.totalorder %s88, %s90
      %p97 = scmp.eq.s32.totalorder %s17, 3
      %p98 = por %p96, %p97
      %p99 = scmp.ne.s32.totalorder %s90, %s91
      %p100 = scmp.eq.s32.totalorder %s17, 0
      %p101 = por %p99, %p100
      %p102 = scmp.ne.s32.totalorder %s90, %s91
      %p103 = scmp.eq.s32.totalorder %s18, 3
      %p104 = por %p102, %p103
      %p106 = scmp.ne.s32.totalorder %s91, %s105
      %p107 = scmp.eq.s32.totalorder %s18, 0
      %p108 = por %p106, %p107
      %p109 = scmp.le.s32.totalorder 1, %s12
      %p110 = scmp.lt.s32.totalorder %s12, 5
      %p111 = pnand %p109, %p110
      %p112 = pneg %p111
      // Predicated region
      $region9: #{tpu_custom_call.1} parent=5 // pred_check
        _
      $region10: #{tpu_custom_call.1} parent=5 // pred_check_branch
        %114 = sbr.rel (%p111) target = $region12
      $region11: #{tpu_custom_call.1} parent=5 // pred_region
        %s115 = ssub.s32 %s12, 1
        // Predicated region
        $region13: #{tpu_custom_call.1} parent=11 // pred_check
          %p116 = pneg %p59
        $region14: #{tpu_custom_call.1} parent=11 // pred_check_branch
          %118 = sbr.rel (%p116) target = $region16
        $region15: #{tpu_custom_call.1} parent=11 // pred_region
          _
        $region16: #{tpu_custom_call.1} parent=11 // pred_fallthru
          _
      $region12: #{tpu_custom_call.1} parent=5 // pred_fallthru
        _
      %p119 = scmp.lt.s32.totalorder %s12, 4
      // Predicated region
      $region17: #{tpu_custom_call.1} parent=5 // pred_check
        %p120 = pneg %p119
      $region18: #{tpu_custom_call.1} parent=5 // pred_check_branch
        %122 = sbr.rel (%p120) target = $region20
      $region19: #{tpu_custom_call.1} parent=5 // pred_region
        // Predicated region
        $region21: #{tpu_custom_call.1} parent=19 // pred_check
          %p123 = pneg %p32
        $region22: #{tpu_custom_call.1} parent=19 // pred_check_branch
          %125 = sbr.rel (%p123) target = $region24
        $region23: #{tpu_custom_call.1} parent=19 // pred_region
          %p126 = scmp.lt.s32.totalorder %s12, 3
          %s127 = scalar_select %p126, %s12, 3
          %s128 = smul.addr %s127, 8
          %s129 = scalar_lea.vmem %s0, %s128
        $region24: #{tpu_custom_call.1} parent=19 // pred_fallthru
          _
      $region20: #{tpu_custom_call.1} parent=5 // pred_fallthru
        _
      %p130 = scmp.le.s32.totalorder 1, %s12
      %p131 = scmp.lt.s32.totalorder %s12, 5
      %p132 = pnand %p130, %p131
      %p133 = pneg %p132
      // Predicated region
      $region25: #{tpu_custom_call.1} parent=5 // pred_check
        _
      $region26: #{tpu_custom_call.1} parent=5 // pred_check_branch
        %135 = sbr.rel (%p132) target = $region28
      $region27: #{tpu_custom_call.1} parent=5 // pred_region
        %s136 = ssub.s32 %s12, 1
        %p137 = scmp.lt.s32.totalorder %s17, 3
        %s138 = scalar_select %p137, %s17, 3
        %s139 = smul.addr %s138, 8
        %s140 = scalar_lea.vmem %s0, %s139
        %p141 = pneg %p38
        %p142 = pneg %p35
        %p143 = pneg %p59
        %p144 = pneg %p56
        %p145 = pneg %p80
        %p146 = pneg %p77
        %p147 = pneg %p101
        %p148 = pneg %p98
        %p149 = scmp.lt.s32.totalorder %s17, 3
        %s150 = scalar_select %p149, %s17, 3
        %s151 = smul.addr %s150, 8
        %s152 = scalar_lea.vmem %s0, %s151
        %p153 = scmp.eq.s32.totalorder %s17, 0
        // Predicated region
        $region29: #{tpu_custom_call.1} parent=27 // pred_check
          %p154 = pneg %p153
        $region30: #{tpu_custom_call.1} parent=27 // pred_check_branch
          %156 = sbr.rel (%p154) target = $region32
        $region31: #{tpu_custom_call.1} parent=27 // pred_region
          %vm157 = vcmask 24576
          %158 = vst.msk [vmem:[#allocation2] sm:$0x1] %vm157, 0.0
          %159 = vst.msk [vmem:[#allocation4] sm:$0x1] %vm157, 0.0
        $region32: #{tpu_custom_call.1} parent=27 // pred_fallthru
          _
        %v160 = vld [vmem:[%s152] sm:$0xff]
        %v161 = vld [vmem:[%s1] sm:$0x3f]
        %vm162 = vcmask 48128
        %v164 = vsel %vm162, %v160, 0
        %vm166 = vcmask 1045504
        %v168 = vsel %vm166, %v161, 0
        %170 = vmatprep.subr.mxu0 0.0
        %171 = vmatpush1.msra.mxu0 0.0
        %172 = vmatprep.subr.mxu0 0.0
        %173 = vmatpush1.msra.mxu0 0.0
        %174 = vmatprep.subr.mxu0 0.0
        %175 = vmatpush1.msra.mxu0 0.0
        %176 = vmatprep.subr.mxu0 0.0
        %177 = vmatpush1.msra.mxu0 0.0
        %178 = vmatprep.subr.mxu0 0.0
        %179 = vmatpush1.msra.mxu0 0.0
        %180 = vmatprep.subr.mxu0 0.0
        %181 = vmatpush1.msra.mxu0 0.0
        %182 = vmatprep.subr.mxu0 0.0
        %183 = vmatpush1.msra.mxu0 0.0
        %184 = vmatprep.subr.mxu0 0.0
        %185 = vmatpush1.msra.mxu0 0.0
        %186 = vmatprep.subr.mxu0 0.0
        %187 = vmatpush1.msra.mxu0 0.0
        %188 = vmatprep.subr.mxu0 0.0
        %189 = vmatpush1.msra.mxu0 0.0
        %190 = vmatprep.subr.mxu0 0.0
        %191 = vmatpush1.msra.mxu0 0.0
        %192 = vmatprep.subr.mxu0 0.0
        %193 = vmatpush1.msra.mxu0 0.0
        %194 = vmatprep.subr.mxu0 0.0
        %195 = vmatpush1.msra.mxu0 0.0
        %196 = vmatprep.subr.mxu0 0.0
        %197 = vmatpush1.msra.mxu0 0.0
        %198 = vmatprep.subr.mxu0 0.0
        %199 = vmatpush1.msra.mxu0 0.0
        %200 = vmatprep.subr.mxu0 0.0
        %v201 = vand.u32 %v168, 4294901760
        %202 = vmatpush1.msra.mxu0 %v201
        %203 = vmatprep.subr.mxu0 0.0
        %204 = vmatpush2.msra.mxu0 0.0
        %205 = vmatprep.subr.mxu0 0.0
        %206 = vmatpush2.msra.mxu0 0.0
        %207 = vmatprep.subr.mxu0 0.0
        %208 = vmatpush2.msra.mxu0 0.0
        %209 = vmatprep.subr.mxu0 0.0
        %210 = vmatpush2.msra.mxu0 0.0
        %211 = vmatprep.subr.mxu0 0.0
        %212 = vmatpush2.msra.mxu0 0.0
        %213 = vmatprep.subr.mxu0 0.0
        %214 = vmatpush2.msra.mxu0 0.0
        %215 = vmatprep.subr.mxu0 0.0
        %216 = vmatpush2.msra.mxu0 0.0
        %217 = vmatprep.subr.mxu0 0.0
        %218 = vmatpush2.msra.mxu0 0.0
        %219 = vmatprep.subr.mxu0 0.0
        %220 = vmatpush2.msra.mxu0 0.0
        %221 = vmatprep.subr.mxu0 0.0
        %222 = vmatpush2.msra.mxu0 0.0
        %223 = vmatprep.subr.mxu0 0.0
        %224 = vmatpush2.msra.mxu0 0.0
        %225 = vmatprep.subr.mxu0 0.0
        %226 = vmatpush2.msra.mxu0 0.0
        %227 = vmatprep.subr.mxu0 0.0
        %228 = vmatpush2.msra.mxu0 0.0
        %229 = vmatprep.subr.mxu0 0.0
        %230 = vmatpush2.msra.mxu0 0.0
        %231 = vmatprep.subr.mxu0 0.0
        %232 = vmatpush2.msra.mxu0 0.0
        %233 = vmatprep.subr.mxu0 0.0
        %234 = vmatpush2.msra.mxu0 0.0
        %235 = vmatprep.mubr.f32.mxu0 0.0
        %v236 = vand.u32 %v164, 4294901760
        %v237 = vsub.f32 %v164, %v236
        %v238 = vand.u32 %v237, 4294901760
        %v239 = vsub.f32 %v237, %v238
        %v240 = vand.u32 %v239, 4294901760
        %241 = vmatmul.mubr.f32.gmra.mxu0 %v240
        %v242 = vpop.f32.mrf.mxu0
        %v243 = vadd.f32 0.0, %v242
        %v244 = vpop.f32.mrf.mxu0
        %245 = vdwg.mxu0
        %246 = vmatprep.subr.mxu0 0.0
        %247 = vmatpush1.msra.mxu0 0.0
        %248 = vmatprep.subr.mxu0 0.0
        %249 = vmatpush1.msra.mxu0 0.0
        %250 = vmatprep.subr.mxu0 0.0
        %251 = vmatpush1.msra.mxu0 0.0
        %252 = vmatprep.subr.mxu0 0.0
        %253 = vmatpush1.msra.mxu0 0.0
        %254 = vmatprep.subr.mxu0 0.0
        %255 = vmatpush1.msra.mxu0 0.0
        %256 = vmatprep.subr.mxu0 0.0
        %257 = vmatpush1.msra.mxu0 0.0
        %258 = vmatprep.subr.mxu0 0.0
        %259 = vmatpush1.msra.mxu0 0.0
        %260 = vmatprep.subr.mxu0 0.0
        %261 = vmatpush1.msra.mxu0 0.0
        %262 = vmatprep.subr.mxu0 0.0
        %263 = vmatpush1.msra.mxu0 0.0
        %264 = vmatprep.subr.mxu0 0.0
        %265 = vmatpush1.msra.mxu0 0.0
        %266 = vmatprep.subr.mxu0 0.0
        %267 = vmatpush1.msra.mxu0 0.0
        %268 = vmatprep.subr.mxu0 0.0
        %269 = vmatpush1.msra.mxu0 0.0
        %270 = vmatprep.subr.mxu0 0.0
        %271 = vmatpush1.msra.mxu0 0.0
        %272 = vmatprep.subr.mxu0 0.0
        %273 = vmatpush1.msra.mxu0 0.0
        %274 = vmatprep.subr.mxu0 0.0
        %275 = vmatpush1.msra.mxu0 0.0
        %276 = vmatprep.subr.mxu0 0.0
        %v277 = vand.u32 %v168, 4294901760
        %v278 = vsub.f32 %v168, %v277
        %v279 = vand.u32 %v278, 4294901760
        %v280 = vsub.f32 %v278, %v279
        %v281 = vand.u32 %v280, 4294901760
        %282 = vmatpush1.msra.mxu0 %v281
        %283 = vmatprep.subr.mxu0 0.0
        %284 = vmatpush2.msra.mxu0 0.0
        %285 = vmatprep.subr.mxu0 0.0
        %286 = vmatpush2.msra.mxu0 0.0
        %287 = vmatprep.subr.mxu0 0.0
        %288 = vmatpush2.msra.mxu0 0.0
        %289 = vmatprep.subr.mxu0 0.0
        %290 = vmatpush2.msra.mxu0 0.0
        %291 = vmatprep.subr.mxu0 0.0
        %292 = vmatpush2.msra.mxu0 0.0
        %293 = vmatprep.subr.mxu0 0.0
        %294 = vmatpush2.msra.mxu0 0.0
        %295 = vmatprep.subr.mxu0 0.0
        %296 = vmatpush2.msra.mxu0 0.0
        %297 = vmatprep.subr.mxu0 0.0
        %298 = vmatpush2.msra.mxu0 0.0
        %299 = vmatprep.subr.mxu0 0.0
        %300 = vmatpush2.msra.mxu0 0.0
        %301 = vmatprep.subr.mxu0 0.0
        %302 = vmatpush2.msra.mxu0 0.0
        %303 = vmatprep.subr.mxu0 0.0
        %304 = vmatpush2.msra.mxu0 0.0
        %305 = vmatprep.subr.mxu0 0.0
        %306 = vmatpush2.msra.mxu0 0.0
        %307 = vmatprep.subr.mxu0 0.0
        %308 = vmatpush2.msra.mxu0 0.0
        %309 = vmatprep.subr.mxu0 0.0
        %310 = vmatpush2.msra.mxu0 0.0
        %311 = vmatprep.subr.mxu0 0.0
        %312 = vmatpush2.msra.mxu0 0.0
        %313 = vmatprep.subr.mxu0 0.0
        %314 = vmatpush2.msra.mxu0 0.0
        %315 = vmatprep.mubr.f32.mxu0 0.0
        %v316 = vand.u32 %v164, 4294901760
        %317 = vmatmul.mubr.f32.gmra.mxu0 %v316
        %v318 = vpop.f32.mrf.mxu0
        %v319 = vadd.f32 %v243, %v318
        %v320 = vpop.f32.mrf.mxu0
        %321 = vdwg.mxu0
        %322 = vmatprep.subr.mxu0 0.0
        %323 = vmatpush1.msra.mxu0 0.0
        %324 = vmatprep.subr.mxu0 0.0
        %325 = vmatpush1.msra.mxu0 0.0
        %326 = vmatprep.subr.mxu0 0.0
        %327 = vmatpush1.msra.mxu0 0.0
        %328 = vmatprep.subr.mxu0 0.0
        %329 = vmatpush1.msra.mxu0 0.0
        %330 = vmatprep.subr.mxu0 0.0
        %331 = vmatpush1.msra.mxu0 0.0
        %332 = vmatprep.subr.mxu0 0.0
        %333 = vmatpush1.msra.mxu0 0.0
        %334 = vmatprep.subr.mxu0 0.0
        %335 = vmatpush1.msra.mxu0 0.0
        %336 = vmatprep.subr.mxu0 0.0
        %337 = vmatpush1.msra.mxu0 0.0
        %338 = vmatprep.subr.mxu0 0.0
        %339 = vmatpush1.msra.mxu0 0.0
        %340 = vmatprep.subr.mxu0 0.0
        %341 = vmatpush1.msra.mxu0 0.0
        %342 = vmatprep.subr.mxu0 0.0
        %343 = vmatpush1.msra.mxu0 0.0
        %344 = vmatprep.subr.mxu0 0.0
        %345 = vmatpush1.msra.mxu0 0.0
        %346 = vmatprep.subr.mxu0 0.0
        %347 = vmatpush1.msra.mxu0 0.0
        %348 = vmatprep.subr.mxu0 0.0
        %349 = vmatpush1.msra.mxu0 0.0
        %350 = vmatprep.subr.mxu0 0.0
        %351 = vmatpush1.msra.mxu0 0.0
        %352 = vmatprep.subr.mxu0 0.0
        %v353 = vand.u32 %v168, 4294901760
        %v354 = vsub.f32 %v168, %v353
        %355 = vmatpush1.msra.mxu0 %v354
        %356 = vmatprep.subr.mxu0 0.0
        %357 = vmatpush2.msra.mxu0 0.0
        %358 = vmatprep.subr.mxu0 0.0
        %359 = vmatpush2.msra.mxu0 0.0
        %360 = vmatprep.subr.mxu0 0.0
        %361 = vmatpush2.msra.mxu0 0.0
        %362 = vmatprep.subr.mxu0 0.0
        %363 = vmatpush2.msra.mxu0 0.0
        %364 = vmatprep.subr.mxu0 0.0
        %365 = vmatpush2.msra.mxu0 0.0
        %366 = vmatprep.subr.mxu0 0.0
        %367 = vmatpush2.msra.mxu0 0.0
        %368 = vmatprep.subr.mxu0 0.0
        %369 = vmatpush2.msra.mxu0 0.0
        %370 = vmatprep.subr.mxu0 0.0
        %371 = vmatpush2.msra.mxu0 0.0
        %372 = vmatprep.subr.mxu0 0.0
        %373 = vmatpush2.msra.mxu0 0.0
        %374 = vmatprep.subr.mxu0 0.0
        %375 = vmatpush2.msra.mxu0 0.0
        %376 = vmatprep.subr.mxu0 0.0
        %377 = vmatpush2.msra.mxu0 0.0
        %378 = vmatprep.subr.mxu0 0.0
        %379 = vmatpush2.msra.mxu0 0.0
        %380 = vmatprep.subr.mxu0 0.0
        %381 = vmatpush2.msra.mxu0 0.0
        %382 = vmatprep.subr.mxu0 0.0
        %383 = vmatpush2.msra.mxu0 0.0
        %384 = vmatprep.subr.mxu0 0.0
        %385 = vmatpush2.msra.mxu0 0.0
        %386 = vmatprep.subr.mxu0 0.0
        %387 = vmatpush2.msra.mxu0 0.0
        %388 = vmatprep.mubr.f32.mxu0 0.0
        %v389 = vand.u32 %v164, 4294901760
        %v390 = vsub.f32 %v164, %v389
        %391 = vmatmul.mubr.f32.gmra.mxu0 %v390
        %v392 = vpop.f32.mrf.mxu0
        %v393 = vadd.f32 %v319, %v392
        %v394 = vpop.f32.mrf.mxu0
        %395 = vdwg.mxu0
        %396 = vmatprep.subr.mxu0 0.0
        %397 = vmatpush1.msra.mxu0 0.0
        %398 = vmatprep.subr.mxu0 0.0
        %399 = vmatpush1.msra.mxu0 0.0
        %400 = vmatprep.subr.mxu0 0.0
        %401 = vmatpush1.msra.mxu0 0.0
        %402 = vmatprep.subr.mxu0 0.0
        %403 = vmatpush1.msra.mxu0 0.0
        %404 = vmatprep.subr.mxu0 0.0
        %405 = vmatpush1.msra.mxu0 0.0
        %406 = vmatprep.subr.mxu0 0.0
        %407 = vmatpush1.msra.mxu0 0.0
        %408 = vmatprep.subr.mxu0 0.0
        %409 = vmatpush1.msra.mxu0 0.0
        %410 = vmatprep.subr.mxu0 0.0
        %411 = vmatpush1.msra.mxu0 0.0
        %412 = vmatprep.subr.mxu0 0.0
        %413 = vmatpush1.msra.mxu0 0.0
        %414 = vmatprep.subr.mxu0 0.0
        %415 = vmatpush1.msra.mxu0 0.0
        %416 = vmatprep.subr.mxu0 0.0
        %417 = vmatpush1.msra.mxu0 0.0
        %418 = vmatprep.subr.mxu0 0.0
        %419 = vmatpush1.msra.mxu0 0.0
        %420 = vmatprep.subr.mxu0 0.0
        %421 = vmatpush1.msra.mxu0 0.0
        %422 = vmatprep.subr.mxu0 0.0
        %423 = vmatpush1.msra.mxu0 0.0
        %424 = vmatprep.subr.mxu0 0.0
        %425 = vmatpush1.msra.mxu0 0.0
        %426 = vmatprep.subr.mxu0 0.0
        %v427 = vand.u32 %v168, 4294901760
        %428 = vmatpush1.msra.mxu0 %v427
        %429 = vmatprep.subr.mxu0 0.0
        %430 = vmatpush2.msra.mxu0 0.0
        %431 = vmatprep.subr.mxu0 0.0
        %432 = vmatpush2.msra.mxu0 0.0
        %433 = vmatprep.subr.mxu0 0.0
        %434 = vmatpush2.msra.mxu0 0.0
        %435 = vmatprep.subr.mxu0 0.0
        %436 = vmatpush2.msra.mxu0 0.0
        %437 = vmatprep.subr.mxu0 0.0
        %438 = vmatpush2.msra.mxu0 0.0
        %439 = vmatprep.subr.mxu0 0.0
        %440 = vmatpush2.msra.mxu0 0.0
        %441 = vmatprep.subr.mxu0 0.0
        %442 = vmatpush2.msra.mxu0 0.0
        %443 = vmatprep.subr.mxu0 0.0
        %444 = vmatpush2.msra.mxu0 0.0
        %445 = vmatprep.subr.mxu0 0.0
        %446 = vmatpush2.msra.mxu0 0.0
        %447 = vmatprep.subr.mxu0 0.0
        %448 = vmatpush2.msra.mxu0 0.0
        %449 = vmatprep.subr.mxu0 0.0
        %450 = vmatpush2.msra.mxu0 0.0
        %451 = vmatprep.subr.mxu0 0.0
        %452 = vmatpush2.msra.mxu0 0.0
        %453 = vmatprep.subr.mxu0 0.0
        %454 = vmatpush2.msra.mxu0 0.0
        %455 = vmatprep.subr.mxu0 0.0
        %456 = vmatpush2.msra.mxu0 0.0
        %457 = vmatprep.subr.mxu0 0.0
        %458 = vmatpush2.msra.mxu0 0.0
        %459 = vmatprep.subr.mxu0 0.0
        %460 = vmatpush2.msra.mxu0 0.0
        %461 = vmatprep.mubr.f32.mxu0 0.0
        %v462 = vand.u32 %v164, 4294901760
        %v463 = vsub.f32 %v164, %v462
        %v464 = vand.u32 %v463, 4294901760
        %465 = vmatmul.mubr.f32.gmra.mxu0 %v464
        %v466 = vpop.f32.mrf.mxu0
        %v467 = vadd.f32 %v393, %v466
        %v468 = vpop.f32.mrf.mxu0
        %469 = vdwg.mxu0
        %470 = vmatprep.subr.mxu0 0.0
        %471 = vmatpush1.msra.mxu0 0.0
        %472 = vmatprep.subr.mxu0 0.0
        %473 = vmatpush1.msra.mxu0 0.0
        %474 = vmatprep.subr.mxu0 0.0
        %475 = vmatpush1.msra.mxu0 0.0
        %476 = vmatprep.subr.mxu0 0.0
        %477 = vmatpush1.msra.mxu0 0.0
        %478 = vmatprep.subr.mxu0 0.0
        %479 = vmatpush1.msra.mxu0 0.0
        %480 = vmatprep.subr.mxu0 0.0
        %481 = vmatpush1.msra.mxu0 0.0
        %482 = vmatprep.subr.mxu0 0.0
        %483 = vmatpush1.msra.mxu0 0.0
        %484 = vmatprep.subr.mxu0 0.0
        %485 = vmatpush1.msra.mxu0 0.0
        %486 = vmatprep.subr.mxu0 0.0
        %487 = vmatpush1.msra.mxu0 0.0
        %488 = vmatprep.subr.mxu0 0.0
        %489 = vmatpush1.msra.mxu0 0.0
        %490 = vmatprep.subr.mxu0 0.0
        %491 = vmatpush1.msra.mxu0 0.0
        %492 = vmatprep.subr.mxu0 0.0
        %493 = vmatpush1.msra.mxu0 0.0
        %494 = vmatprep.subr.mxu0 0.0
        %495 = vmatpush1.msra.mxu0 0.0
        %496 = vmatprep.subr.mxu0 0.0
        %497 = vmatpush1.msra.mxu0 0.0
        %498 = vmatprep.subr.mxu0 0.0
        %499 = vmatpush1.msra.mxu0 0.0
        %500 = vmatprep.subr.mxu0 0.0
        %v501 = vand.u32 %v168, 4294901760
        %v502 = vsub.f32 %v168, %v501
        %v503 = vand.u32 %v502, 4294901760
        %504 = vmatpush1.msra.mxu0 %v503
        %505 = vmatprep.subr.mxu0 0.0
        %506 = vmatpush2.msra.mxu0 0.0
        %507 = vmatprep.subr.mxu0 0.0
        %508 = vmatpush2.msra.mxu0 0.0
        %509 = vmatprep.subr.mxu0 0.0
        %510 = vmatpush2.msra.mxu0 0.0
        %511 = vmatprep.subr.mxu0 0.0
        %512 = vmatpush2.msra.mxu0 0.0
        %513 = vmatprep.subr.mxu0 0.0
        %514 = vmatpush2.msra.mxu0 0.0
        %515 = vmatprep.subr.mxu0 0.0
        %516 = vmatpush2.msra.mxu0 0.0
        %517 = vmatprep.subr.mxu0 0.0
        %518 = vmatpush2.msra.mxu0 0.0
        %519 = vmatprep.subr.mxu0 0.0
        %520 = vmatpush2.msra.mxu0 0.0
        %521 = vmatprep.subr.mxu0 0.0
        %522 = vmatpush2.msra.mxu0 0.0
        %523 = vmatprep.subr.mxu0 0.0
        %524 = vmatpush2.msra.mxu0 0.0
        %525 = vmatprep.subr.mxu0 0.0
        %526 = vmatpush2.msra.mxu0 0.0
        %527 = vmatprep.subr.mxu0 0.0
        %528 = vmatpush2.msra.mxu0 0.0
        %529 = vmatprep.subr.mxu0 0.0
        %530 = vmatpush2.msra.mxu0 0.0
        %531 = vmatprep.subr.mxu0 0.0
        %532 = vmatpush2.msra.mxu0 0.0
        %533 = vmatprep.subr.mxu0 0.0
        %534 = vmatpush2.msra.mxu0 0.0
        %535 = vmatprep.subr.mxu0 0.0
        %536 = vmatpush2.msra.mxu0 0.0
        %537 = vmatprep.mubr.f32.mxu0 0.0
        %v538 = vand.u32 %v164, 4294901760
        %539 = vmatmul.mubr.f32.gmra.mxu0 %v538
        %v540 = vpop.f32.mrf.mxu0
        %v541 = vadd.f32 %v467, %v540
        %v542 = vpop.f32.mrf.mxu0
        %543 = vdwg.mxu0
        %544 = vmatprep.subr.mxu0 0.0
        %545 = vmatpush1.msra.mxu0 0.0
        %546 = vmatprep.subr.mxu0 0.0
        %547 = vmatpush1.msra.mxu0 0.0
        %548 = vmatprep.subr.mxu0 0.0
        %549 = vmatpush1.msra.mxu0 0.0
        %550 = vmatprep.subr.mxu0 0.0
        %551 = vmatpush1.msra.mxu0 0.0
        %552 = vmatprep.subr.mxu0 0.0
        %553 = vmatpush1.msra.mxu0 0.0
        %554 = vmatprep.subr.mxu0 0.0
        %555 = vmatpush1.msra.mxu0 0.0
        %556 = vmatprep.subr.mxu0 0.0
        %557 = vmatpush1.msra.mxu0 0.0
        %558 = vmatprep.subr.mxu0 0.0
        %559 = vmatpush1.msra.mxu0 0.0
        %560 = vmatprep.subr.mxu0 0.0
        %561 = vmatpush1.msra.mxu0 0.0
        %562 = vmatprep.subr.mxu0 0.0
        %563 = vmatpush1.msra.mxu0 0.0
        %564 = vmatprep.subr.mxu0 0.0
        %565 = vmatpush1.msra.mxu0 0.0
        %566 = vmatprep.subr.mxu0 0.0
        %567 = vmatpush1.msra.mxu0 0.0
        %568 = vmatprep.subr.mxu0 0.0
        %569 = vmatpush1.msra.mxu0 0.0
        %570 = vmatprep.subr.mxu0 0.0
        %571 = vmatpush1.msra.mxu0 0.0
        %572 = vmatprep.subr.mxu0 0.0
        %573 = vmatpush1.msra.mxu0 0.0
        %574 = vmatprep.subr.mxu0 0.0
        %v575 = vand.u32 %v168, 4294901760
        %576 = vmatpush1.msra.mxu0 %v575
        %577 = vmatprep.subr.mxu0 0.0
        %578 = vmatpush2.msra.mxu0 0.0
        %579 = vmatprep.subr.mxu0 0.0
        %580 = vmatpush2.msra.mxu0 0.0
        %581 = vmatprep.subr.mxu0 0.0
        %582 = vmatpush2.msra.mxu0 0.0
        %583 = vmatprep.subr.mxu0 0.0
        %584 = vmatpush2.msra.mxu0 0.0
        %585 = vmatprep.subr.mxu0 0.0
        %586 = vmatpush2.msra.mxu0 0.0
        %587 = vmatprep.subr.mxu0 0.0
        %588 = vmatpush2.msra.mxu0 0.0
        %589 = vmatprep.subr.mxu0 0.0
        %590 = vmatpush2.msra.mxu0 0.0
        %591 = vmatprep.subr.mxu0 0.0
        %592 = vmatpush2.msra.mxu0 0.0
        %593 = vmatprep.subr.mxu0 0.0
        %594 = vmatpush2.msra.mxu0 0.0
        %595 = vmatprep.subr.mxu0 0.0
        %596 = vmatpush2.msra.mxu0 0.0
        %597 = vmatprep.subr.mxu0 0.0
        %598 = vmatpush2.msra.mxu0 0.0
        %599 = vmatprep.subr.mxu0 0.0
        %600 = vmatpush2.msra.mxu0 0.0
        %601 = vmatprep.subr.mxu0 0.0
        %602 = vmatpush2.msra.mxu0 0.0
        %603 = vmatprep.subr.mxu0 0.0
        %604 = vmatpush2.msra.mxu0 0.0
        %605 = vmatprep.subr.mxu0 0.0
        %606 = vmatpush2.msra.mxu0 0.0
        %607 = vmatprep.subr.mxu0 0.0
        %608 = vmatpush2.msra.mxu0 0.0
        %609 = vmatprep.mubr.f32.mxu0 0.0
        %v610 = vand.u32 %v164, 4294901760
        %611 = vmatmul.mubr.f32.gmra.mxu0 %v610
        %v612 = vpop.f32.mrf.mxu0
        %v613 = vadd.f32 %v541, %v612
        %v614 = vpop.f32.mrf.mxu0
        %615 = vdwg.mxu0
        %v616 = vld [vmem:[#allocation2] sm:$0x1]
        %vm617 = vcmask 31744
        %v618 = vsel %vm617, %v613, 0.0
        %v619 = vrot.slane %v618, 4
        %v620 = vadd.f32 %v618, %v619
        %v621 = vrot.slane %v620, 2
        %v622 = vadd.f32 %v620, %v621
        %v623 = vrot.slane %v622, 1
        %v624 = vadd.f32 %v622, %v623
        %v625 = vadd.f32 %v616, %v624
        %vm626 = vcmask 24576
        %627 = vst.msk [vmem:[#allocation2] sm:$0x1] %vm626, %v625
        %v628 = vld [vmem:[#allocation4] sm:$0x1]
        %v629 = vmul.f32 %v613, %v613
        %v630 = vsel %vm617, %v629, 0.0
        %v631 = vrot.slane %v630, 4
        %v632 = vadd.f32 %v630, %v631
        %v633 = vrot.slane %v632, 2
        %v634 = vadd.f32 %v632, %v633
        %v635 = vrot.slane %v634, 1
        %v636 = vadd.f32 %v634, %v635
        %v637 = vadd.f32 %v628, %v636
        %638 = vst.msk [vmem:[#allocation4] sm:$0x1] %vm626, %v637
        // Predicated region
        $region33: #{tpu_custom_call.1} parent=27 // pred_check
          %p639 = pneg %p77
        $region34: #{tpu_custom_call.1} parent=27 // pred_check_branch
          %641 = sbr.rel (%p639) target = $region36
        $region35: #{tpu_custom_call.1} parent=27 // pred_region
          %s643 = ssub.s32 16, 16
          %644 = vsyncadd [#allocation3], %s643
          %s646 = sshll.u32 [#allocation2], 4
          %s647 = int_to_ptr.vmem [resolvable:$true] %s646
          %649 = dma.vmem_to_hbm [thread:$0]  %s647, 16, %s2, [#allocation3]
        $region36: #{tpu_custom_call.1} parent=27 // pred_fallthru
          _
        // Predicated region
        $region37: #{tpu_custom_call.1} parent=27 // pred_check
          %p650 = pneg %p98
        $region38: #{tpu_custom_call.1} parent=27 // pred_check_branch
          %652 = sbr.rel (%p650) target = $region40
        $region39: #{tpu_custom_call.1} parent=27 // pred_region
          %s654 = ssub.s32 16, 16
          %655 = vsyncadd [#allocation5], %s654
          %s657 = sshll.u32 [#allocation4], 4
          %s658 = int_to_ptr.vmem [resolvable:$true] %s657
          %660 = dma.vmem_to_hbm [thread:$0]  %s658, 16, %s3, [#allocation5]
        $region40: #{tpu_custom_call.1} parent=27 // pred_fallthru
          _
        // Predicated region
        $region41: #{tpu_custom_call.1} parent=27 // pred_check
          %p661 = pneg %p77
        $region42: #{tpu_custom_call.1} parent=27 // pred_check_branch
          %663 = sbr.rel (%p661) target = $region44
        $region43: #{tpu_custom_call.1} parent=27 // pred_region
          %664 = dma.done [#allocation3], 16
        $region44: #{tpu_custom_call.1} parent=27 // pred_fallthru
          _
        // Predicated region
        $region45: #{tpu_custom_call.1} parent=27 // pred_check
          %p665 = pneg %p98
        $region46: #{tpu_custom_call.1} parent=27 // pred_check_branch
          %667 = sbr.rel (%p665) target = $region48
        $region47: #{tpu_custom_call.1} parent=27 // pred_region
          %668 = dma.done [#allocation5], 16
        $region48: #{tpu_custom_call.1} parent=27 // pred_fallthru
          _
      $region28: #{tpu_custom_call.1} parent=5 // pred_fallthru
        _
      %p669 = scmp.le.s32.totalorder 2, %s12
      // Predicated region
      $region49: #{tpu_custom_call.1} parent=5 // pred_check
        %p670 = pneg %p669
      $region50: #{tpu_custom_call.1} parent=5 // pred_check_branch
        %672 = sbr.rel (%p670) target = $region52
      $region51: #{tpu_custom_call.1} parent=5 // pred_region
        %s673 = ssub.s32 %s12, 2
      $region52: #{tpu_custom_call.1} parent=5 // pred_fallthru
        _
    $region6: #{tpu_custom_call.1} parent=1 // loop_footer
      %s16 = sadd.s32 1, %s12
    $region7: #{tpu_custom_call.1} parent=1 // loop_footer_branch
      %11 = sbr.rel target = $region3
    $region8: #{tpu_custom_call.1} parent=1 // loop_exit
      _
    %674 = vsyncpa [#allocation3], 1
    %s675 = scalar_lea.sflag [#allocation3], 1
    %676 = vsyncpa %s675, 1
    %677 = vsyncpa [#allocation5], 1

</llo_original>
